<compile_context>
chip_gen: v7x
topology: tpu7x:2x2x1
jax: 0.10.0
libtpu: 0.0.40
codegen_flags: <defaults>
</compile_context>

<pallas_src>
import jax
import jax.numpy as jnp
from jax.experimental import pallas as pl
from jax.experimental.pallas import tpu as pltpu

POOL = 8           # pooler resolution (P x P)
REP = 128          # representation_size of fc6 / fc7 (FPN2MLP feature extractor)
NUM_REG = 2        # padreg bidirection -> 2 ratios (top / bottom padding)
REG_PAD = 128      # lane-pad the predictor output dim for unmasked 128-lane stores


def _box_head_kernel(x_ref, w6_ref, b6_ref, w7_ref, b7_ref, wp_ref, bp_ref,
                     feat_ref, reg_ref):
    # fc6 + ReLU: one MXU dot over the full K (w6 is VMEM-resident, single-buffered).
    h6 = jnp.dot(x_ref[...], w6_ref[...], preferred_element_type=jnp.float32)
    h6 = jnp.maximum(h6 + b6_ref[...], 0.0)
    # fc7 + ReLU.
    h7 = jnp.dot(h6.astype(w7_ref.dtype), w7_ref[...],
                 preferred_element_type=jnp.float32)
    h7 = jnp.maximum(h7 + b7_ref[...], 0.0)
    feat_ref[...] = h7.astype(feat_ref.dtype)
    # padreg predictor (lane-padded to 128 lanes for unmasked vector stores).
    reg = jnp.dot(h7.astype(wp_ref.dtype), wp_ref[...],
                  preferred_element_type=jnp.float32) + bp_ref[...]
    reg_ref[...] = reg.astype(reg_ref.dtype)


def _round_up(v, m):
    return ((v + m - 1) // m) * m


def _device_tuning():
    """Per-generation tiling heuristics (perf-only; defaults are the safe v7x case)."""
    kind = ""
    try:
        kind = jax.devices()[0].device_kind.lower()
    except Exception:
        pass
    if ("v5e" in kind) or ("v5 lite" in kind) or ("v5litepod" in kind):
        return dict(mxu_m=128, vmem_cap=128 << 20, two_cores=False)
    if "v6" in kind:
        return dict(mxu_m=256, vmem_cap=128 << 20, two_cores=False)
    # v7x / unknown: conservative 64 MiB VMEM per TensorCore, 2 TensorCores per chip.
    return dict(mxu_m=256, vmem_cap=64 << 20, two_cores=True)


def _vmem_need(tr, d):
    """Rough VMEM footprint (bytes) of the chosen tiling."""
    return (2 * tr * d * 2                        # x tile (bf16, double-buffered)
            + d * REP * 2                         # resident fc6 weight (bf16)
            + REP * REP * 2 + REP * REG_PAD * 2   # fc7 / predictor weights (bf16)
            + 2 * REP * 4 + REG_PAD * 4           # biases (f32)
            + 2 * tr * (REP + REG_PAD) * 4)       # outputs (f32, double-buffered)


def _choose_tr(r, d, tune):
    tr = tune["mxu_m"]
    if tune["two_cores"] and r > 8:
        # ensure r_tiles >= 2 so both TensorCores get ROI work on the parallel axis
        tr = min(tr, max(8, _round_up(-(-r // 2), 8)))
    # never make the tile (much) taller than the ROI count itself
    tr = min(tr, max(8, _round_up(r, 8)))
    # shrink if the resident-w6 tiling would blow the VMEM tile budget
    budget = tune["vmem_cap"] // 2
    while _vmem_need(tr, d) > budget and tr > 8:
        tr = max(8, _round_up(tr // 2, 8))
    # TODO(synk): for extreme D where even TR=8 with a resident w6 exceeds VMEM,
    #             fall back to a K-tiled grid with an f32 accumulator.
    return tr


def box_head_forward(pooled, params):
    """pooled: [R, D] (or [R, C, P, P]) ROI features -> (x [R, REP], reg_vals [R, NUM_REG])."""
    R = pooled.shape[0]
    x = pooled.reshape(R, -1)
    D = x.shape[1]
    if R == 0:  # no proposals: avoid a zero-extent grid axis
        return jnp.zeros((0, REP), jnp.float32), jnp.zeros((0, NUM_REG), jnp.float32)

    # bf16 MXU inputs; biases, accumulation and outputs stay f32.
    if x.dtype != jnp.bfloat16:
        x = x.astype(jnp.bfloat16)
    w6 = params["w6"].astype(jnp.bfloat16)
    w7 = params["w7"].astype(jnp.bfloat16)
    wp = params["wp"].astype(jnp.bfloat16)
    b6 = params["b6"].astype(jnp.float32)
    b7 = params["b7"].astype(jnp.float32)
    bp = params["bp"].astype(jnp.float32)

    tune = _device_tuning()
    TR = _choose_tr(R, D, tune)
    r_tiles = pl.cdiv(R, TR)       # no wrapper pad: Pallas masks the partial tail block

    const = lambda i: (0, 0)
    resident = dict(pipeline_mode=pl.Buffered(1))   # grid-invariant blocks: single buffer

    need = _vmem_need(TR, D)
    vmem_limit = int(min(tune["vmem_cap"] * 3 // 4,
                         max(need + (8 << 20), 16 << 20)))

    feat, reg = pl.pallas_call(
        _box_head_kernel,
        out_shape=(jax.ShapeDtypeStruct((R, REP), jnp.float32),
                   jax.ShapeDtypeStruct((R, REG_PAD), jnp.float32)),
        grid_spec=pltpu.PrefetchScalarGridSpec(
            num_scalar_prefetch=0,
            grid=(r_tiles,),
            in_specs=[
                pl.BlockSpec((TR, D), lambda i: (i, 0)),           # ROI feature tile
                pl.BlockSpec((D, REP), const, **resident),         # fc6 weight (resident)
                pl.BlockSpec((1, REP), const, **resident),         # fc6 bias
                pl.BlockSpec((REP, REP), const, **resident),       # fc7 weight
                pl.BlockSpec((1, REP), const, **resident),         # fc7 bias
                pl.BlockSpec((REP, REG_PAD), const, **resident),   # predictor weight
                pl.BlockSpec((1, REG_PAD), const, **resident),     # predictor bias
            ],
            out_specs=[
                pl.BlockSpec((TR, REP), lambda i: (i, 0)),
                pl.BlockSpec((TR, REG_PAD), lambda i: (i, 0)),
            ],
        ),
        compiler_params=pltpu.CompilerParams(
            dimension_semantics=("parallel",),
            vmem_limit_bytes=vmem_limit,
        ),
    )(x, w6, b6, w7, b7, wp, bp)
    return feat, reg[:, :NUM_REG]


def roi_pool(features, boxes, batch_idx, pool=POOL, out_dtype=jnp.bfloat16):
    """ROI pooler: nearest-neighbour sample a pool x pool grid inside each box and
    flatten to the bf16 [R, C*P*P] matrix the box head consumes (single HBM pass).

    features: [N, C, H, W] (NCHW), boxes: [R, 4] (x1, y1, x2, y2) in feature-map coords.
    """
    # TODO(synk): real ROIAlign uses bilinear sampling with sampling_ratio sub-bins and a
    #             spatial_scale; the gather could also be fused into the Pallas kernel via
    #             scalar prefetch + make_async_copy to remove the pooled HBM roundtrip.
    N, C, H, W = features.shape
    R = boxes.shape[0]
    x1, y1, x2, y2 = boxes[:, 0], boxes[:, 1], boxes[:, 2], boxes[:, 3]
    grid = (jnp.arange(pool, dtype=jnp.float32) + 0.5) / pool            # [P]
    ys = y1[:, None] + grid[None, :] * (y2 - y1)[:, None]                # [R, P]
    xs = x1[:, None] + grid[None, :] * (x2 - x1)[:, None]                # [R, P]
    yi = jnp.clip(jnp.round(ys).astype(jnp.int32), 0, H - 1)             # [R, P]
    xi = jnp.clip(jnp.round(xs).astype(jnp.int32), 0, W - 1)             # [R, P]
    c_idx = jnp.arange(C, dtype=jnp.int32)
    flat = ((batch_idx[:, None, None, None] * C + c_idx[None, :, None, None]) * H
            + yi[:, None, :, None]) * W + xi[:, None, None, :]           # [R, C, P, P]
    pooled = jnp.take(features.astype(out_dtype).reshape(-1),
                      flat.reshape(R, -1), axis=0)                       # [R, C*P*P] bf16
    return pooled


def post_process(reg_vals, boxes):
    """padreg post-processor (eval path): pad each box vertically by the predicted ratios."""
    # TODO(synk): the cfg-defined post_processor also re-wraps BoxLists / fields.
    y1, y2 = boxes[:, 1], boxes[:, 3]
    h = y2 - y1
    new_y1 = y1 - reg_vals[:, 0] * h
    new_y2 = y2 + reg_vals[:, 1] * h
    return jnp.stack([boxes[:, 0], new_y1, boxes[:, 2], new_y2], axis=1)


def make_params(key, in_channels):
    D = in_channels * POOL * POOL
    k6, k7, kp = jax.random.split(key, 3)
    wp_real = 0.02 * jax.random.normal(kp, (REP, NUM_REG), jnp.float32)
    wp = jnp.zeros((REP, REG_PAD), jnp.float32).at[:, :NUM_REG].set(wp_real)
    return dict(
        w6=(0.02 * jax.random.normal(k6, (D, REP), jnp.float32)).astype(jnp.bfloat16),
        b6=jnp.linspace(-0.1, 0.1, REP, dtype=jnp.float32).reshape(1, REP),
        w7=(0.02 * jax.random.normal(k7, (REP, REP), jnp.float32)).astype(jnp.bfloat16),
        b7=jnp.linspace(0.1, -0.1, REP, dtype=jnp.float32).reshape(1, REP),
        wp=wp.astype(jnp.bfloat16),
        bp=jnp.zeros((1, REG_PAD), jnp.float32),
    )


@jax.jit
def forward_eval(features, boxes, batch_idx, params):
    """Eval (query=False) hot path of ROIBoxHead_padreg.forward."""
    pooled = roi_pool(features, boxes, batch_idx)        # glue: gather + bf16 cast fused
    x_feat, reg_vals = box_head_forward(pooled, params)  # Pallas: fc6+fc7+predictor
    result = post_process(reg_vals, boxes)               # glue: padded boxes
    return x_feat, reg_vals, result


if __name__ == "__main__":
    key = jax.random.PRNGKey(0)
    kf, kb, kparams = jax.random.split(key, 3)

    N, C, H, W = 2, 4, 16, 16           # small NCHW feature map
    R = 16                              # number of proposals (total over the batch)

    features = jax.random.normal(kf, (N, C, H, W), jnp.float32)

    # proposals: R boxes (x1, y1, x2, y2) in feature-map coords + their batch index
    u = jax.random.uniform(kb, (R, 4), jnp.float32)
    bx1 = u[:, 0] * (W / 2)
    by1 = u[:, 1] * (H / 2)
    bx2 = jnp.clip(bx1 + 2.0 + u[:, 2] * (W / 2), 0.0, W - 1.0)
    by2 = jnp.clip(by1 + 2.0 + u[:, 3] * (H / 2), 0.0, H - 1.0)
    boxes = jnp.stack([bx1, by1, bx2, by2], axis=1)
    batch_idx = jnp.arange(R, dtype=jnp.int32) % N

    params = make_params(kparams, C)

    x_feat, reg_vals, result = forward_eval(features, boxes, batch_idx, params)
    jax.block_until_ready((x_feat, reg_vals, result))
    assert x_feat.shape == (R, REP) and reg_vals.shape == (R, NUM_REG)
    assert result.shape == (R, 4)
    assert bool(jnp.all(jnp.isfinite(x_feat))) and bool(jnp.all(jnp.isfinite(reg_vals)))
    print("KERNEL_OK")
</pallas_src>

<mosaic_0001>
module attributes {stable_mosaic.version = 11 : i64} {
  func.func @_box_head_kernel(%arg0: i32, %arg1: memref<8x256xbf16, #tpu.memory_space<vmem>>, %arg2: memref<256x128xbf16, #tpu.memory_space<vmem>>, %arg3: memref<1x128xf32, #tpu.memory_space<vmem>>, %arg4: memref<128x128xbf16, #tpu.memory_space<vmem>>, %arg5: memref<1x128xf32, #tpu.memory_space<vmem>>, %arg6: memref<128x128xbf16, #tpu.memory_space<vmem>>, %arg7: memref<1x128xf32, #tpu.memory_space<vmem>>, %arg8: memref<8x128xf32, #tpu.memory_space<vmem>>, %arg9: memref<8x128xf32, #tpu.memory_space<vmem>>) attributes {dimension_semantics = [#tpu.dimension_semantics<parallel>], iteration_bounds = array<i64: 2>, scalar_prefetch = 0 : i64, scratch_operands = 0 : i64, tpu.core_type = #tpu.core_type<tc>, window_params = [{transform_indices = @transform_0, window_bounds = array<i64: 8, 256>}, {pipeline_mode = #tpu.pipeline_mode<synchronous>, transform_indices = @transform_1, window_bounds = array<i64: 256, 128>}, {pipeline_mode = #tpu.pipeline_mode<synchronous>, transform_indices = @transform_2, window_bounds = array<i64: 1, 128>}, {pipeline_mode = #tpu.pipeline_mode<synchronous>, transform_indices = @transform_3, window_bounds = array<i64: 128, 128>}, {pipeline_mode = #tpu.pipeline_mode<synchronous>, transform_indices = @transform_4, window_bounds = array<i64: 1, 128>}, {pipeline_mode = #tpu.pipeline_mode<synchronous>, transform_indices = @transform_5, window_bounds = array<i64: 128, 128>}, {pipeline_mode = #tpu.pipeline_mode<synchronous>, transform_indices = @transform_6, window_bounds = array<i64: 1, 128>}, {transform_indices = @transform_7, window_bounds = array<i64: 8, 128>}, {transform_indices = @transform_8, window_bounds = array<i64: 8, 128>}]} {
    %c0 = arith.constant 0 : index
    %c0_0 = arith.constant 0 : index
    %0 = vector.load %arg1[%c0, %c0_0] : memref<8x256xbf16, #tpu.memory_space<vmem>>, vector<8x256xbf16>
    %c0_1 = arith.constant 0 : index
    %c0_2 = arith.constant 0 : index
    %1 = vector.load %arg2[%c0_1, %c0_2] : memref<256x128xbf16, #tpu.memory_space<vmem>>, vector<256x128xbf16>
    %cst = arith.constant dense<0.000000e+00> : vector<8x128xf32>
    %2 = tpu.matmul %0, %1, %cst {dimension_numbers = #tpu.dot_dimension_numbers<[1], [0], [0], [1], [0, 0, 1, 1], [], []>} : vector<8x256xbf16>, vector<256x128xbf16>, vector<8x128xf32> -> vector<8x128xf32>
    %c0_3 = arith.constant 0 : index
    %c0_4 = arith.constant 0 : index
    %3 = vector.load %arg3[%c0_3, %c0_4] : memref<1x128xf32, #tpu.memory_space<vmem>>, vector<1x128xf32>
    %4 = vector.broadcast %3 : vector<1x128xf32> to vector<8x128xf32>
    %5 = arith.addf %2, %4 : vector<8x128xf32>
    %cst_5 = arith.constant 0.000000e+00 : f32
    %6 = vector.broadcast %cst_5 : f32 to vector<8x128xf32>
    %7 = arith.maximumf %5, %6 : vector<8x128xf32>
    %8 = arith.truncf %7 : vector<8x128xf32> to vector<8x128xbf16>
    %c0_6 = arith.constant 0 : index
    %c0_7 = arith.constant 0 : index
    %9 = vector.load %arg4[%c0_6, %c0_7] : memref<128x128xbf16, #tpu.memory_space<vmem>>, vector<128x128xbf16>
    %cst_8 = arith.constant dense<0.000000e+00> : vector<8x128xf32>
    %10 = tpu.matmul %8, %9, %cst_8 {dimension_numbers = #tpu.dot_dimension_numbers<[1], [0], [0], [1], [0, 0, 1, 1], [], []>} : vector<8x128xbf16>, vector<128x128xbf16>, vector<8x128xf32> -> vector<8x128xf32>
    %c0_9 = arith.constant 0 : index
    %c0_10 = arith.constant 0 : index
    %11 = vector.load %arg5[%c0_9, %c0_10] : memref<1x128xf32, #tpu.memory_space<vmem>>, vector<1x128xf32>
    %12 = vector.broadcast %11 : vector<1x128xf32> to vector<8x128xf32>
    %13 = arith.addf %10, %12 : vector<8x128xf32>
    %cst_11 = arith.constant 0.000000e+00 : f32
    %14 = vector.broadcast %cst_11 : f32 to vector<8x128xf32>
    %15 = arith.maximumf %13, %14 : vector<8x128xf32>
    %c0_12 = arith.constant 0 : index
    %c0_13 = arith.constant 0 : index
    %16 = vector.load %arg8[%c0_12, %c0_13] : memref<8x128xf32, #tpu.memory_space<vmem>>, vector<8x128xf32>
    tpu.vector_store %arg8[%c0_12, %c0_13], %15 {strides = array<i32>} : memref<8x128xf32, #tpu.memory_space<vmem>>, vector<8x128xf32>,
    %17 = arith.truncf %15 : vector<8x128xf32> to vector<8x128xbf16>
    %c0_14 = arith.constant 0 : index
    %c0_15 = arith.constant 0 : index
    %18 = vector.load %arg6[%c0_14, %c0_15] : memref<128x128xbf16, #tpu.memory_space<vmem>>, vector<128x128xbf16>
    %cst_16 = arith.constant dense<0.000000e+00> : vector<8x128xf32>
    %19 = tpu.matmul %17, %18, %cst_16 {dimension_numbers = #tpu.dot_dimension_numbers<[1], [0], [0], [1], [0, 0, 1, 1], [], []>} : vector<8x128xbf16>, vector<128x128xbf16>, vector<8x128xf32> -> vector<8x128xf32>
    %c0_17 = arith.constant 0 : index
    %c0_18 = arith.constant 0 : index
    %20 = vector.load %arg7[%c0_17, %c0_18] : memref<1x128xf32, #tpu.memory_space<vmem>>, vector<1x128xf32>
    %21 = vector.broadcast %20 : vector<1x128xf32> to vector<8x128xf32>
    %22 = arith.addf %19, %21 : vector<8x128xf32>
    %c0_19 = arith.constant 0 : index
    %c0_20 = arith.constant 0 : index
    %23 = vector.load %arg9[%c0_19, %c0_20] : memref<8x128xf32, #tpu.memory_space<vmem>>, vector<8x128xf32>
    tpu.vector_store %arg9[%c0_19, %c0_20], %22 {strides = array<i32>} : memref<8x128xf32, #tpu.memory_space<vmem>>, vector<8x128xf32>,
    return
  }
  func.func @transform_0(%arg0: i32) -> (i32, i32) {
    %c0_i32 = arith.constant 0 : i32
    %c0_i32_0 = arith.constant 0 : i32
    return %arg0, %c0_i32 : i32, i32
  }
  func.func @transform_1(%arg0: i32) -> (i32, i32) {
    %c0_i32 = arith.constant 0 : i32
    %c0_i32_0 = arith.constant 0 : i32
    %c0_i32_1 = arith.constant 0 : i32
    return %c0_i32, %c0_i32_0 : i32, i32
  }
  func.func @transform_2(%arg0: i32) -> (i32, i32) {
    %c0_i32 = arith.constant 0 : i32
    %c0_i32_0 = arith.constant 0 : i32
    %c0_i32_1 = arith.constant 0 : i32
    return %c0_i32, %c0_i32_0 : i32, i32
  }
  func.func @transform_3(%arg0: i32) -> (i32, i32) {
    %c0_i32 = arith.constant 0 : i32
    %c0_i32_0 = arith.constant 0 : i32
    %c0_i32_1 = arith.constant 0 : i32
    return %c0_i32, %c0_i32_0 : i32, i32
  }
  func.func @transform_4(%arg0: i32) -> (i32, i32) {
    %c0_i32 = arith.constant 0 : i32
    %c0_i32_0 = arith.constant 0 : i32
    %c0_i32_1 = arith.constant 0 : i32
    return %c0_i32, %c0_i32_0 : i32, i32
  }
  func.func @transform_5(%arg0: i32) -> (i32, i32) {
    %c0_i32 = arith.constant 0 : i32
    %c0_i32_0 = arith.constant 0 : i32
    %c0_i32_1 = arith.constant 0 : i32
    return %c0_i32, %c0_i32_0 : i32, i32
  }
  func.func @transform_6(%arg0: i32) -> (i32, i32) {
    %c0_i32 = arith.constant 0 : i32
    %c0_i32_0 = arith.constant 0 : i32
    %c0_i32_1 = arith.constant 0 : i32
    return %c0_i32, %c0_i32_0 : i32, i32
  }
  func.func @transform_7(%arg0: i32) -> (i32, i32) {
    %c0_i32 = arith.constant 0 : i32
    %c0_i32_0 = arith.constant 0 : i32
    return %arg0, %c0_i32 : i32, i32
  }
  func.func @transform_8(%arg0: i32) -> (i32, i32) {
    %c0_i32 = arith.constant 0 : i32
    %c0_i32_0 = arith.constant 0 : i32
    return %arg0, %c0_i32 : i32, i32
  }
}

</mosaic_0001>

<llo_original>
// kernel: forward_eval.1
$region0: #{forward_eval.1}
  #allocation0 [shape = 'u32[]', space=smem, size = 0x4, offset = 0x4, fixed_abs, tag = 'smem constant byte address 0x4 - core index']
  #allocation1 [shape = 'u32[144,128]{1,0:T(1,128)}', space=vmem, size = 0x12000, scoped, tag = 'internal scratch']
  %s0 = inlined_call_operand.vmem [shape: bf16[16,256], index: 0, kind: input, shape index: {}]
  %s1 = inlined_call_operand.vmem [shape: bf16[256,128], index: 1, kind: input, shape index: {}]
  %s2 = inlined_call_operand.vmem [shape: f32[1,128], index: 2, kind: input, shape index: {}]
  %s3 = inlined_call_operand.vmem [shape: bf16[128,128], index: 3, kind: input, shape index: {}]
  %s4 = inlined_call_operand.vmem [shape: f32[1,128], index: 4, kind: input, shape index: {}]
  %s5 = inlined_call_operand.vmem [shape: bf16[128,128], index: 5, kind: input, shape index: {}]
  %s6 = inlined_call_operand.vmem [shape: f32[1,128], index: 6, kind: input, shape index: {}]
  %s7 = inlined_call_operand.hbm [shape: f32[16,128], index: 7, kind: output, shape index: {0}]
  %s8 = inlined_call_operand.vmem [shape: f32[16,128], index: 8, kind: output, shape index: {1}]
  %9 = xla_tuple %s7, %s8
  %s10 = sld [smem:[#allocation0]]
  $region69: #{forward_eval.1} parent=0
    _
  %s12 = ssub.s32 1, %s10
  %s13 = scalar_select 0, %s12, %s10
  $region1: #{forward_eval.1} parent=0
    #allocation2 [shape = 'u8[8192]{0}', space=vmem, size = 0x2000, scoped, tag = 'output window, operand 0']
    #allocation3 [shape = 's32[2]{0}', space=sflag, size = 0x8, scoped, tag = 'scoped memory for forward_eval.1']
    %14 = vsyncpa [#allocation3], 0
    %s15 = scalar_lea.sflag [#allocation3], 1
    %16 = vsyncpa %s15, 0
    loop: start=0, step=1, limit=4
    $region2: #{forward_eval.1} parent=1 // loop_pre_header
      _
    $region3: #{forward_eval.1} parent=1 // loop_header
      %s18 = sphi 0, %s22
      %p19 = scmp.ge.s32.totalorder %s18, 4
      %s28 = sphi 0, %s30
      %s31 = sphi 0, %s28
      %s32 = sphi 0, %s31
      %s48 = sphi 0, %s32
      %s52 = sphi 0, %s52
      %s54 = sphi 0, %s52
      %s55 = sphi 0, %s54
      %s69 = sphi 0, %s55
      %s73 = sphi 0, %s73
      %s75 = sphi 0, %s73
      %s76 = sphi 0, %s75
      %s90 = sphi 0, %s76
      %s94 = sphi 0, %s94
      %s96 = sphi 0, %s94
      %s97 = sphi 0, %s96
      %s111 = sphi 0, %s97
      %s115 = sphi 0, %s115
      %s117 = sphi 0, %s115
      %s118 = sphi 0, %s117
      %s132 = sphi 0, %s118
      %s136 = sphi 0, %s136
      %s138 = sphi 0, %s136
      %s139 = sphi 0, %s138
      %s153 = sphi 0, %s139
      %s157 = sphi 0, %s157
      %s159 = sphi 0, %s157
      %s160 = sphi 0, %s159
      %s174 = sphi 0, %s160
      %s180 = sphi 0, %s182
      %s183 = sphi 0, %s180
      %s184 = sphi 0, %s183
      %s200 = sphi 0, %s184
      %s206 = sphi 0, %s208
      %s209 = sphi 0, %s206
      %s210 = sphi 0, %s209
      %s226 = sphi 0, %s210
    $region4: #{forward_eval.1} parent=1 // loop_header_branch
      %21 = sbr.rel (%p19) target = $region8
    $region5: #{forward_eval.1} parent=1 // loop_body
      %s23 = ssub.s32 %s18, 1
      %s24 = ssub.s32 %s18, 2
      %s25 = sadd.s32 %s18, 1
      %s26 = ssub.s32 %s18, %s25
      %p27 = scmp.eq.s32.totalorder %s26, 0
      %s29 = sadd.s32 %s28, 1
      %s30 = scalar_select %p27, %s28, %s29
      %p33 = pneg %p27
      %p34 = scmp.eq.s32.totalorder %s18, 1
      %p35 = por %p33, %p34
      %p36 = scmp.ne.s32.totalorder %s28, %s31
      %p37 = scmp.eq.s32.totalorder %s18, 0
      %p38 = por %p36, %p37
      %p39 = scmp.ne.s32.totalorder %s28, %s31
      %p40 = scmp.eq.s32.totalorder %s23, 1
      %p41 = por %p39, %p40
      %p42 = scmp.ne.s32.totalorder %s31, %s32
      %p43 = scmp.eq.s32.totalorder %s23, 0
      %p44 = por %p42, %p43
      %p45 = scmp.ne.s32.totalorder %s31, %s32
      %p46 = scmp.eq.s32.totalorder %s24, 1
      %p47 = por %p45, %p46
      %p49 = scmp.ne.s32.totalorder %s32, %s48
      %p50 = scmp.eq.s32.totalorder %s24, 0
      %p51 = por %p49, %p50
      %s53 = sadd.s32 %s52, 1
      %p56 = scmp.eq.s32.totalorder %s18, 1
      %p57 = scmp.ne.s32.totalorder %s52, %s54
      %p58 = scmp.eq.s32.totalorder %s18, 0
      %p59 = por %p57, %p58
      %p60 = scmp.ne.s32.totalorder %s52, %s54
      %p61 = scmp.eq.s32.totalorder %s23, 1
      %p62 = por %p60, %p61
      %p63 = scmp.ne.s32.totalorder %s54, %s55
      %p64 = scmp.eq.s32.totalorder %s23, 0
      %p65 = por %p63, %p64
      %p66 = scmp.ne.s32.totalorder %s54, %s55
      %p67 = scmp.eq.s32.totalorder %s24, 1
      %p68 = por %p66, %p67
      %p70 = scmp.ne.s32.totalorder %s55, %s69
      %p71 = scmp.eq.s32.totalorder %s24, 0
      %p72 = por %p70, %p71
      %s74 = sadd.s32 %s73, 1
      %p77 = scmp.eq.s32.totalorder %s18, 1
      %p78 = scmp.ne.s32.totalorder %s73, %s75
      %p79 = scmp.eq.s32.totalorder %s18, 0
      %p80 = por %p78, %p79
      %p81 = scmp.ne.s32.totalorder %s73, %s75
      %p82 = scmp.eq.s32.totalorder %s23, 1
      %p83 = por %p81, %p82
      %p84 = scmp.ne.s32.totalorder %s75, %s76
      %p85 = scmp.eq.s32.totalorder %s23, 0
      %p86 = por %p84, %p85
      %p87 = scmp.ne.s32.totalorder %s75, %s76
      %p88 = scmp.eq.s32.totalorder %s24, 1
      %p89 = por %p87, %p88
      %p91 = scmp.ne.s32.totalorder %s76, %s90
      %p92 = scmp.eq.s32.totalorder %s24, 0
      %p93 = por %p91, %p92
      %s95 = sadd.s32 %s94, 1
      %p98 = scmp.eq.s32.totalorder %s18, 1
      %p99 = scmp.ne.s32.totalorder %s94, %s96
      %p100 = scmp.eq.s32.totalorder %s18, 0
      %p101 = por %p99, %p100
      %p102 = scmp.ne.s32.totalorder %s94, %s96
      %p103 = scmp.eq.s32.totalorder %s23, 1
      %p104 = por %p102, %p103
      %p105 = scmp.ne.s32.totalorder %s96, %s97
      %p106 = scmp.eq.s32.totalorder %s23, 0
      %p107 = por %p105, %p106
      %p108 = scmp.ne.s32.totalorder %s96, %s97
      %p109 = scmp.eq.s32.totalorder %s24, 1
      %p110 = por %p108, %p109
      %p112 = scmp.ne.s32.totalorder %s97, %s111
      %p113 = scmp.eq.s32.totalorder %s24, 0
      %p114 = por %p112, %p113
      %s116 = sadd.s32 %s115, 1
      %p119 = scmp.eq.s32.totalorder %s18, 1
      %p120 = scmp.ne.s32.totalorder %s115, %s117
      %p121 = scmp.eq.s32.totalorder %s18, 0
      %p122 = por %p120, %p121
      %p123 = scmp.ne.s32.totalorder %s115, %s117
      %p124 = scmp.eq.s32.totalorder %s23, 1
      %p125 = por %p123, %p124
      %p126 = scmp.ne.s32.totalorder %s117, %s118
      %p127 = scmp.eq.s32.totalorder %s23, 0
      %p128 = por %p126, %p127
      %p129 = scmp.ne.s32.totalorder %s117, %s118
      %p130 = scmp.eq.s32.totalorder %s24, 1
      %p131 = por %p129, %p130
      %p133 = scmp.ne.s32.totalorder %s118, %s132
      %p134 = scmp.eq.s32.totalorder %s24, 0
      %p135 = por %p133, %p134
      %s137 = sadd.s32 %s136, 1
      %p140 = scmp.eq.s32.totalorder %s18, 1
      %p141 = scmp.ne.s32.totalorder %s136, %s138
      %p142 = scmp.eq.s32.totalorder %s18, 0
      %p143 = por %p141, %p142
      %p144 = scmp.ne.s32.totalorder %s136, %s138
      %p145 = scmp.eq.s32.totalorder %s23, 1
      %p146 = por %p144, %p145
      %p147 = scmp.ne.s32.totalorder %s138, %s139
      %p148 = scmp.eq.s32.totalorder %s23, 0
      %p149 = por %p147, %p148
      %p150 = scmp.ne.s32.totalorder %s138, %s139
      %p151 = scmp.eq.s32.totalorder %s24, 1
      %p152 = por %p150, %p151
      %p154 = scmp.ne.s32.totalorder %s139, %s153
      %p155 = scmp.eq.s32.totalorder %s24, 0
      %p156 = por %p154, %p155
      %s158 = sadd.s32 %s157, 1
      %p161 = scmp.eq.s32.totalorder %s18, 1
      %p162 = scmp.ne.s32.totalorder %s157, %s159
      %p163 = scmp.eq.s32.totalorder %s18, 0
      %p164 = por %p162, %p163
      %p165 = scmp.ne.s32.totalorder %s157, %s159
      %p166 = scmp.eq.s32.totalorder %s23, 1
      %p167 = por %p165, %p166
      %p168 = scmp.ne.s32.totalorder %s159, %s160
      %p169 = scmp.eq.s32.totalorder %s23, 0
      %p170 = por %p168, %p169
      %p171 = scmp.ne.s32.totalorder %s159, %s160
      %p172 = scmp.eq.s32.totalorder %s24, 1
      %p173 = por %p171, %p172
      %p175 = scmp.ne.s32.totalorder %s160, %s174
      %p176 = scmp.eq.s32.totalorder %s24, 0
      %p177 = por %p175, %p176
      %s178 = ssub.s32 %s18, %s25
      %p179 = scmp.eq.s32.totalorder %s178, 0
      %s181 = sadd.s32 %s180, 1
      %s182 = scalar_select %p179, %s180, %s181
      %p185 = pneg %p179
      %p186 = scmp.eq.s32.totalorder %s18, 1
      %p187 = por %p185, %p186
      %p188 = scmp.ne.s32.totalorder %s180, %s183
      %p189 = scmp.eq.s32.totalorder %s18, 0
      %p190 = por %p188, %p189
      %p191 = scmp.ne.s32.totalorder %s180, %s183
      %p192 = scmp.eq.s32.totalorder %s23, 1
      %p193 = por %p191, %p192
      %p194 = scmp.ne.s32.totalorder %s183, %s184
      %p195 = scmp.eq.s32.totalorder %s23, 0
      %p196 = por %p194, %p195
      %p197 = scmp.ne.s32.totalorder %s183, %s184
      %p198 = scmp.eq.s32.totalorder %s24, 1
      %p199 = por %p197, %p198
      %p201 = scmp.ne.s32.totalorder %s184, %s200
      %p202 = scmp.eq.s32.totalorder %s24, 0
      %p203 = por %p201, %p202
      %s204 = ssub.s32 %s18, %s25
      %p205 = scmp.eq.s32.totalorder %s204, 0
      %s207 = sadd.s32 %s206, 1
      %s208 = scalar_select %p205, %s206, %s207
      %p211 = pneg %p205
      %p212 = scmp.eq.s32.totalorder %s18, 1
      %p213 = por %p211, %p212
      %p214 = scmp.ne.s32.totalorder %s206, %s209
      %p215 = scmp.eq.s32.totalorder %s18, 0
      %p216 = por %p214, %p215
      %p217 = scmp.ne.s32.totalorder %s206, %s209
      %p218 = scmp.eq.s32.totalorder %s23, 1
      %p219 = por %p217, %p218
      %p220 = scmp.ne.s32.totalorder %s209, %s210
      %p221 = scmp.eq.s32.totalorder %s23, 0
      %p222 = por %p220, %p221
      %p223 = scmp.ne.s32.totalorder %s209, %s210
      %p224 = scmp.eq.s32.totalorder %s24, 1
      %p225 = por %p223, %p224
      %p227 = scmp.ne.s32.totalorder %s210, %s226
      %p228 = scmp.eq.s32.totalorder %s24, 0
      %p229 = por %p227, %p228
      %p230 = scmp.le.s32.totalorder 1, %s18
      %p231 = scmp.lt.s32.totalorder %s18, 3
      %p232 = pnand %p230, %p231
      %p233 = pneg %p232
      // Predicated region
      $region9: #{forward_eval.1} parent=5 // pred_check
        _
      $region10: #{forward_eval.1} parent=5 // pred_check_branch
        %235 = sbr.rel (%p232) target = $region12
      $region11: #{forward_eval.1} parent=5 // pred_region
        %s236 = ssub.s32 %s18, 1
        // Predicated region
        $region13: #{forward_eval.1} parent=11 // pred_check
          %p237 = pneg %p65
        $region14: #{forward_eval.1} parent=11 // pred_check_branch
          %239 = sbr.rel (%p237) target = $region16
        $region15: #{forward_eval.1} parent=11 // pred_region
          _
        $region16: #{forward_eval.1} parent=11 // pred_fallthru
          _
        // Predicated region
        $region17: #{forward_eval.1} parent=11 // pred_check
          %p240 = pneg %p86
        $region18: #{forward_eval.1} parent=11 // pred_check_branch
          %242 = sbr.rel (%p240) target = $region20
        $region19: #{forward_eval.1} parent=11 // pred_region
          _
        $region20: #{forward_eval.1} parent=11 // pred_fallthru
          _
        // Predicated region
        $region21: #{forward_eval.1} parent=11 // pred_check
          %p243 = pneg %p107
        $region22: #{forward_eval.1} parent=11 // pred_check_branch
          %245 = sbr.rel (%p243) target = $region24
        $region23: #{forward_eval.1} parent=11 // pred_region
          _
        $region24: #{forward_eval.1} parent=11 // pred_fallthru
          _
        // Predicated region
        $region25: #{forward_eval.1} parent=11 // pred_check
          %p246 = pneg %p128
        $region26: #{forward_eval.1} parent=11 // pred_check_branch
          %248 = sbr.rel (%p246) target = $region28
        $region27: #{forward_eval.1} parent=11 // pred_region
          _
        $region28: #{forward_eval.1} parent=11 // pred_fallthru
          _
        // Predicated region
        $region29: #{forward_eval.1} parent=11 // pred_check
          %p249 = pneg %p149
        $region30: #{forward_eval.1} parent=11 // pred_check_branch
          %251 = sbr.rel (%p249) target = $region32
        $region31: #{forward_eval.1} parent=11 // pred_region
          _
        $region32: #{forward_eval.1} parent=11 // pred_fallthru
          _
        // Predicated region
        $region33: #{forward_eval.1} parent=11 // pred_check
          %p252 = pneg %p170
        $region34: #{forward_eval.1} parent=11 // pred_check_branch
          %254 = sbr.rel (%p252) target = $region36
        $region35: #{forward_eval.1} parent=11 // pred_region
          _
        $region36: #{forward_eval.1} parent=11 // pred_fallthru
          _
      $region12: #{forward_eval.1} parent=5 // pred_fallthru
        _
      %p255 = scmp.lt.s32.totalorder %s18, 2
      // Predicated region
      $region37: #{forward_eval.1} parent=5 // pred_check
        %p256 = pneg %p255
      $region38: #{forward_eval.1} parent=5 // pred_check_branch
        %258 = sbr.rel (%p256) target = $region40
      $region39: #{forward_eval.1} parent=5 // pred_region
        // Predicated region
        $region41: #{forward_eval.1} parent=39 // pred_check
          %p259 = pneg %p38
        $region42: #{forward_eval.1} parent=39 // pred_check_branch
          %261 = sbr.rel (%p259) target = $region44
        $region43: #{forward_eval.1} parent=39 // pred_region
          %p262 = scmp.lt.s32.totalorder %s18, 1
          %s263 = scalar_select %p262, %s18, 1
          %s264 = smul.addr %s263, 2
          %s265 = smul.addr %s264, 4
          %s266 = scalar_lea.vmem %s0, %s265
        $region44: #{forward_eval.1} parent=39 // pred_fallthru
          _
      $region40: #{forward_eval.1} parent=5 // pred_fallthru
        _
      %p267 = scmp.le.s32.totalorder 1, %s18
      %p268 = scmp.lt.s32.totalorder %s18, 3
      %p269 = pnand %p267, %p268
      %p270 = pneg %p269
      // Predicated region
      $region45: #{forward_eval.1} parent=5 // pred_check
        _
      $region46: #{forward_eval.1} parent=5 // pred_check_branch
        %272 = sbr.rel (%p269) target = $region48
      $region47: #{forward_eval.1} parent=5 // pred_region
        %s273 = ssub.s32 %s18, 1
        %p274 = scmp.lt.s32.totalorder %s23, 1
        %s275 = scalar_select %p274, %s23, 1
        %s276 = smul.addr %s275, 2
        %s277 = smul.addr %s276, 4
        %s278 = scalar_lea.vmem %s0, %s277
        %p279 = pneg %p44
        %p280 = pneg %p41
        %p281 = pneg %p65
        %p282 = pneg %p62
        %p283 = pneg %p86
        %p284 = pneg %p83
        %p285 = pneg %p107
        %p286 = pneg %p104
        %p287 = pneg %p128
        %p288 = pneg %p125
        %p289 = pneg %p149
        %p290 = pneg %p146
        %p291 = pneg %p170
        %p292 = pneg %p167
        %p293 = pneg %p196
        %p294 = pneg %p193
        %s295 = sand.u32 %s183, 1
        %s296 = scalar_lea.sflag [#allocation3], %s295
        %s297 = sand.u32 %s183, 1
        %s298 = smul.addr %s297, 8
        %s299 = scalar_lea.vmem [#allocation2], %s298
        %p300 = pneg %p222
        %p301 = pneg %p219
        %p302 = scmp.lt.s32.totalorder %s23, 1
        %s303 = scalar_select %p302, %s23, 1
        %s304 = smul.addr %s303, 8
        %s305 = scalar_lea.vmem %s8, %s304
        %p306 = scmp.lt.s32.totalorder %s23, 1
        %s307 = scalar_select %p306, %s23, 1
        %s308 = smul.addr %s307, 2
        %s309 = smul.addr %s308, 4
        %s310 = scalar_lea.vmem %s0, %s309
        %p311 = scmp.lt.s32.totalorder %s23, 1
        %s312 = scalar_select %p311, %s23, 1
        %s313 = smul.addr %s312, 8
        %s314 = scalar_lea.vmem %s8, %s313
        %v316 = vld [vmem:[%s310] sm:$0xff]
        %v317 = vld [vmem:[%s1] sm:$0xf]
        %v318 = vld [vmem:[%s1 + $0x4] sm:$0xf]
        %v319 = vld [vmem:[%s1 + $0x8] sm:$0xf]
        %v320 = vld [vmem:[%s1 + $0xc] sm:$0xf]
        %v321 = vld [vmem:[%s1 + $0x10] sm:$0xf]
        %v322 = vld [vmem:[%s1 + $0x14] sm:$0xf]
        %v323 = vld [vmem:[%s1 + $0x18] sm:$0xf]
        %v324 = vld [vmem:[%s1 + $0x1c] sm:$0xf]
        %v325 = vld [vmem:[%s1 + $0x20] sm:$0xf]
        %v326 = vld [vmem:[%s1 + $0x24] sm:$0xf]
        %v327 = vld [vmem:[%s1 + $0x28] sm:$0xf]
        %v328 = vld [vmem:[%s1 + $0x2c] sm:$0xf]
        %v329 = vld [vmem:[%s1 + $0x30] sm:$0xf]
        %v330 = vld [vmem:[%s1 + $0x34] sm:$0xf]
        %v331 = vld [vmem:[%s1 + $0x38] sm:$0xf]
        %v332 = vld [vmem:[%s1 + $0x3c] sm:$0xf]
        %v333 = vld [vmem:[%s1 + $0x40] sm:$0xf]
        %v334 = vld [vmem:[%s1 + $0x44] sm:$0xf]
        %v335 = vld [vmem:[%s1 + $0x48] sm:$0xf]
        %v336 = vld [vmem:[%s1 + $0x4c] sm:$0xf]
        %v337 = vld [vmem:[%s1 + $0x50] sm:$0xf]
        %v338 = vld [vmem:[%s1 + $0x54] sm:$0xf]
        %v339 = vld [vmem:[%s1 + $0x58] sm:$0xf]
        %v340 = vld [vmem:[%s1 + $0x5c] sm:$0xf]
        %v341 = vld [vmem:[%s1 + $0x60] sm:$0xf]
        %v342 = vld [vmem:[%s1 + $0x64] sm:$0xf]
        %v343 = vld [vmem:[%s1 + $0x68] sm:$0xf]
        %v344 = vld [vmem:[%s1 + $0x6c] sm:$0xf]
        %v345 = vld [vmem:[%s1 + $0x70] sm:$0xf]
        %v346 = vld [vmem:[%s1 + $0x74] sm:$0xf]
        %v347 = vld [vmem:[%s1 + $0x78] sm:$0xf]
        %v348 = vld [vmem:[%s1 + $0x7c] sm:$0xf]
        %v349 = vld [vmem:[%s2] sm:$0x1]
        %v351 = vlaneseq
        %v352 = vshrl.u32 %v351, 7
        %v353 = vsub.s32 0, %v352
        %v354 = vrot.slane %v349, %v353
        %v357 = vunpack.c.l.b16 %v316
        %v358 = vunpack.c.h.b16 %v316
        %v359 = vpack.c.b16 %v357, %v357
        %v360 = vpack.c.b16 %v358, %v358
        %v395 = vunpack.c.l.b16 %v317
        %v396 = vunpack.c.l.b16 %v318
        %v397 = vunpack.c.l.b16 %v319
        %v398 = vunpack.c.l.b16 %v320
        %v399 = vunpack.c.l.b16 %v321
        %v400 = vunpack.c.l.b16 %v322
        %v401 = vunpack.c.l.b16 %v323
        %v402 = vunpack.c.l.b16 %v324
        %v403 = vunpack.c.l.b16 %v325
        %v404 = vunpack.c.l.b16 %v326
        %v405 = vunpack.c.l.b16 %v327
        %v406 = vunpack.c.l.b16 %v328
        %v407 = vunpack.c.l.b16 %v329
        %v408 = vunpack.c.l.b16 %v330
        %v409 = vunpack.c.l.b16 %v331
        %v410 = vunpack.c.l.b16 %v332
        %v411 = vunpack.c.l.b16 %v333
        %v412 = vunpack.c.l.b16 %v334
        %v413 = vunpack.c.l.b16 %v335
        %v414 = vunpack.c.l.b16 %v336
        %v415 = vunpack.c.l.b16 %v337
        %v416 = vunpack.c.l.b16 %v338
        %v417 = vunpack.c.l.b16 %v339
        %v418 = vunpack.c.l.b16 %v340
        %v419 = vunpack.c.l.b16 %v341
        %v420 = vunpack.c.l.b16 %v342
        %v421 = vunpack.c.l.b16 %v343
        %v422 = vunpack.c.l.b16 %v344
        %v423 = vunpack.c.l.b16 %v345
        %v424 = vunpack.c.l.b16 %v346
        %v425 = vunpack.c.l.b16 %v347
        %v426 = vunpack.c.l.b16 %v348
        %v427 = vpack.c.b16 %v396, %v395
        %v428 = vpack.c.b16 %v398, %v397
        %v429 = vpack.c.b16 %v400, %v399
        %v430 = vpack.c.b16 %v402, %v401
        %v431 = vpack.c.b16 %v404, %v403
        %v432 = vpack.c.b16 %v406, %v405
        %v433 = vpack.c.b16 %v408, %v407
        %v434 = vpack.c.b16 %v410, %v409
        %v435 = vpack.c.b16 %v412, %v411
        %v436 = vpack.c.b16 %v414, %v413
        %v437 = vpack.c.b16 %v416, %v415
        %v438 = vpack.c.b16 %v418, %v417
        %v439 = vpack.c.b16 %v420, %v419
        %v440 = vpack.c.b16 %v422, %v421
        %v441 = vpack.c.b16 %v424, %v423
        %v442 = vpack.c.b16 %v426, %v425
        %459 = vmatprep.subr.bf16.mxu0 0
        %460 = vmatpush1.bf16.msra.mxu0 %v427
        %461 = vmatprep.subr.bf16.mxu0 0
        %462 = vmatpush1.bf16.msra.mxu0 %v428
        %463 = vmatprep.subr.bf16.mxu0 0
        %464 = vmatpush1.bf16.msra.mxu0 %v429
        %465 = vmatprep.subr.bf16.mxu0 0
        %466 = vmatpush1.bf16.msra.mxu0 %v430
        %467 = vmatprep.subr.bf16.mxu0 0
        %468 = vmatpush1.bf16.msra.mxu0 %v431
        %469 = vmatprep.subr.bf16.mxu0 0
        %470 = vmatpush1.bf16.msra.mxu0 %v432
        %471 = vmatprep.subr.bf16.mxu0 0
        %472 = vmatpush1.bf16.msra.mxu0 %v433
        %473 = vmatprep.subr.bf16.mxu0 0
        %474 = vmatpush1.bf16.msra.mxu0 %v434
        %475 = vmatprep.subr.bf16.mxu0 0
        %476 = vmatpush1.bf16.msra.mxu0 %v435
        %477 = vmatprep.subr.bf16.mxu0 0
        %478 = vmatpush1.bf16.msra.mxu0 %v436
        %479 = vmatprep.subr.bf16.mxu0 0
        %480 = vmatpush1.bf16.msra.mxu0 %v437
        %481 = vmatprep.subr.bf16.mxu0 0
        %482 = vmatpush1.bf16.msra.mxu0 %v438
        %483 = vmatprep.subr.bf16.mxu0 0
        %484 = vmatpush1.bf16.msra.mxu0 %v439
        %485 = vmatprep.subr.bf16.mxu0 0
        %486 = vmatpush1.bf16.msra.mxu0 %v440
        %487 = vmatprep.subr.bf16.mxu0 0
        %488 = vmatpush1.bf16.msra.mxu0 %v441
        %489 = vmatprep.subr.bf16.mxu0 0
        %490 = vmatpush1.bf16.msra.mxu0 %v442
        %491 = vmatprep.mubr.bf16.mxu0 %v360
        %492 = vmatmul.mubr.bf16.gmra.mrb[0].mxu0 %v359
        %v493 = vpop.f32.mrb[0].mxu0
        %v494 = vadd.f32 %v354, %v493
        %v495 = vpop.f32.mrb[0].mxu0
        %v496 = vpop.f32.mrb[0].mxu0
        %v497 = vpop.f32.mrb[0].mxu0
        %498 = vdwg.mxu0
        %v499 = vmax.f32 %v494, 0.0
        %v500 = vpack.c.bf16 %v499, %v499
        %v501 = vld [vmem:[%s3] sm:$0xf]
        %v502 = vld [vmem:[%s3 + $0x4] sm:$0xf]
        %v503 = vld [vmem:[%s3 + $0x8] sm:$0xf]
        %v504 = vld [vmem:[%s3 + $0xc] sm:$0xf]
        %v505 = vld [vmem:[%s3 + $0x10] sm:$0xf]
        %v506 = vld [vmem:[%s3 + $0x14] sm:$0xf]
        %v507 = vld [vmem:[%s3 + $0x18] sm:$0xf]
        %v508 = vld [vmem:[%s3 + $0x1c] sm:$0xf]
        %v509 = vld [vmem:[%s3 + $0x20] sm:$0xf]
        %v510 = vld [vmem:[%s3 + $0x24] sm:$0xf]
        %v511 = vld [vmem:[%s3 + $0x28] sm:$0xf]
        %v512 = vld [vmem:[%s3 + $0x2c] sm:$0xf]
        %v513 = vld [vmem:[%s3 + $0x30] sm:$0xf]
        %v514 = vld [vmem:[%s3 + $0x34] sm:$0xf]
        %v515 = vld [vmem:[%s3 + $0x38] sm:$0xf]
        %v516 = vld [vmem:[%s3 + $0x3c] sm:$0xf]
        %v517 = vld [vmem:[%s4] sm:$0x1]
        %v519 = vlaneseq
        %v520 = vshrl.u32 %v519, 7
        %v521 = vsub.s32 0, %v520
        %v522 = vrot.slane %v517, %v521
        %v540 = vunpack.c.l.b16 %v501
        %v541 = vunpack.c.l.b16 %v502
        %v542 = vunpack.c.l.b16 %v503
        %v543 = vunpack.c.l.b16 %v504
        %v544 = vunpack.c.l.b16 %v505
        %v545 = vunpack.c.l.b16 %v506
        %v546 = vunpack.c.l.b16 %v507
        %v547 = vunpack.c.l.b16 %v508
        %v548 = vunpack.c.l.b16 %v509
        %v549 = vunpack.c.l.b16 %v510
        %v550 = vunpack.c.l.b16 %v511
        %v551 = vunpack.c.l.b16 %v512
        %v552 = vunpack.c.l.b16 %v513
        %v553 = vunpack.c.l.b16 %v514
        %v554 = vunpack.c.l.b16 %v515
        %v555 = vunpack.c.l.b16 %v516
        %v556 = vpack.c.b16 %v541, %v540
        %v557 = vpack.c.b16 %v543, %v542
        %v558 = vpack.c.b16 %v545, %v544
        %v559 = vpack.c.b16 %v547, %v546
        %v560 = vpack.c.b16 %v549, %v548
        %v561 = vpack.c.b16 %v551, %v550
        %v562 = vpack.c.b16 %v553, %v552
        %v563 = vpack.c.b16 %v555, %v554
        %572 = vmatprep.subr.bf16.mxu0 0
        %573 = vmatpush1.bf16.msra.mxu0 %v556
        %574 = vmatprep.subr.bf16.mxu0 0
        %575 = vmatpush1.bf16.msra.mxu0 %v557
        %576 = vmatprep.subr.bf16.mxu0 0
        %577 = vmatpush1.bf16.msra.mxu0 %v558
        %578 = vmatprep.subr.bf16.mxu0 0
        %579 = vmatpush1.bf16.msra.mxu0 %v559
        %580 = vmatprep.subr.bf16.mxu0 0
        %581 = vmatpush1.bf16.msra.mxu0 %v560
        %582 = vmatprep.subr.bf16.mxu0 0
        %583 = vmatpush1.bf16.msra.mxu0 %v561
        %584 = vmatprep.subr.bf16.mxu0 0
        %585 = vmatpush1.bf16.msra.mxu0 %v562
        %586 = vmatprep.subr.bf16.mxu0 0
        %587 = vmatpush1.bf16.msra.mxu0 %v563
        %588 = vmatprep.subr.bf16.mxu0 0
        %589 = vmatpush1.bf16.msra.mxu0 0
        %590 = vmatprep.subr.bf16.mxu0 0
        %591 = vmatpush1.bf16.msra.mxu0 0
        %592 = vmatprep.subr.bf16.mxu0 0
        %593 = vmatpush1.bf16.msra.mxu0 0
        %594 = vmatprep.subr.bf16.mxu0 0
        %595 = vmatpush1.bf16.msra.mxu0 0
        %596 = vmatprep.subr.bf16.mxu0 0
        %597 = vmatpush1.bf16.msra.mxu0 0
        %598 = vmatprep.subr.bf16.mxu0 0
        %599 = vmatpush1.bf16.msra.mxu0 0
        %600 = vmatprep.subr.bf16.mxu0 0
        %601 = vmatpush1.bf16.msra.mxu0 0
        %602 = vmatprep.subr.bf16.mxu0 0
        %603 = vmatpush1.bf16.msra.mxu0 0
        %604 = vmatprep.mubr.bf16.mxu0 0
        %605 = vmatmul.mubr.bf16.gmra.mrb[0].mxu0 %v500
        %v606 = vpop.f32.mrb[0].mxu0
        %v607 = vadd.f32 %v522, %v606
        %v608 = vpop.f32.mrb[0].mxu0
        %v609 = vpop.f32.mrb[0].mxu0
        %v610 = vpop.f32.mrb[0].mxu0
        %611 = vdwg.mxu0
        %v612 = vmax.f32 %v607, 0.0
        %613 = vst [vmem:[%s299] sm:$0xff] %v612
        %v614 = vpack.c.bf16 %v612, %v612
        %v615 = vld [vmem:[%s5] sm:$0xf]
        %v616 = vld [vmem:[%s5 + $0x4] sm:$0xf]
        %v617 = vld [vmem:[%s5 + $0x8] sm:$0xf]
        %v618 = vld [vmem:[%s5 + $0xc] sm:$0xf]
        %v619 = vld [vmem:[%s5 + $0x10] sm:$0xf]
        %v620 = vld [vmem:[%s5 + $0x14] sm:$0xf]
        %v621 = vld [vmem:[%s5 + $0x18] sm:$0xf]
        %v622 = vld [vmem:[%s5 + $0x1c] sm:$0xf]
        %v623 = vld [vmem:[%s5 + $0x20] sm:$0xf]
        %v624 = vld [vmem:[%s5 + $0x24] sm:$0xf]
        %v625 = vld [vmem:[%s5 + $0x28] sm:$0xf]
        %v626 = vld [vmem:[%s5 + $0x2c] sm:$0xf]
        %v627 = vld [vmem:[%s5 + $0x30] sm:$0xf]
        %v628 = vld [vmem:[%s5 + $0x34] sm:$0xf]
        %v629 = vld [vmem:[%s5 + $0x38] sm:$0xf]
        %v630 = vld [vmem:[%s5 + $0x3c] sm:$0xf]
        %v631 = vld [vmem:[%s6] sm:$0x1]
        %v633 = vlaneseq
        %v634 = vshrl.u32 %v633, 7
        %v635 = vsub.s32 0, %v634
        %v636 = vrot.slane %v631, %v635
        %v654 = vunpack.c.l.b16 %v615
        %v655 = vunpack.c.l.b16 %v616
        %v656 = vunpack.c.l.b16 %v617
        %v657 = vunpack.c.l.b16 %v618
        %v658 = vunpack.c.l.b16 %v619
        %v659 = vunpack.c.l.b16 %v620
        %v660 = vunpack.c.l.b16 %v621
        %v661 = vunpack.c.l.b16 %v622
        %v662 = vunpack.c.l.b16 %v623
        %v663 = vunpack.c.l.b16 %v624
        %v664 = vunpack.c.l.b16 %v625
        %v665 = vunpack.c.l.b16 %v626
        %v666 = vunpack.c.l.b16 %v627
        %v667 = vunpack.c.l.b16 %v628
        %v668 = vunpack.c.l.b16 %v629
        %v669 = vunpack.c.l.b16 %v630
        %v670 = vpack.c.b16 %v655, %v654
        %v671 = vpack.c.b16 %v657, %v656
        %v672 = vpack.c.b16 %v659, %v658
        %v673 = vpack.c.b16 %v661, %v660
        %v674 = vpack.c.b16 %v663, %v662
        %v675 = vpack.c.b16 %v665, %v664
        %v676 = vpack.c.b16 %v667, %v666
        %v677 = vpack.c.b16 %v669, %v668
        %686 = vmatprep.subr.bf16.mxu0 0
        %687 = vmatpush1.bf16.msra.mxu0 %v670
        %688 = vmatprep.subr.bf16.mxu0 0
        %689 = vmatpush1.bf16.msra.mxu0 %v671
        %690 = vmatprep.subr.bf16.mxu0 0
        %691 = vmatpush1.bf16.msra.mxu0 %v672
        %692 = vmatprep.subr.bf16.mxu0 0
        %693 = vmatpush1.bf16.msra.mxu0 %v673
        %694 = vmatprep.subr.bf16.mxu0 0
        %695 = vmatpush1.bf16.msra.mxu0 %v674
        %696 = vmatprep.subr.bf16.mxu0 0
        %697 = vmatpush1.bf16.msra.mxu0 %v675
        %698 = vmatprep.subr.bf16.mxu0 0
        %699 = vmatpush1.bf16.msra.mxu0 %v676
        %700 = vmatprep.subr.bf16.mxu0 0
        %701 = vmatpush1.bf16.msra.mxu0 %v677
        %702 = vmatprep.subr.bf16.mxu0 0
        %703 = vmatpush1.bf16.msra.mxu0 0
        %704 = vmatprep.subr.bf16.mxu0 0
        %705 = vmatpush1.bf16.msra.mxu0 0
        %706 = vmatprep.subr.bf16.mxu0 0
        %707 = vmatpush1.bf16.msra.mxu0 0
        %708 = vmatprep.subr.bf16.mxu0 0
        %709 = vmatpush1.bf16.msra.mxu0 0
        %710 = vmatprep.subr.bf16.mxu0 0
        %711 = vmatpush1.bf16.msra.mxu0 0
        %712 = vmatprep.subr.bf16.mxu0 0
        %713 = vmatpush1.bf16.msra.mxu0 0
        %714 = vmatprep.subr.bf16.mxu0 0
        %715 = vmatpush1.bf16.msra.mxu0 0
        %716 = vmatprep.subr.bf16.mxu0 0
        %717 = vmatpush1.bf16.msra.mxu0 0
        %718 = vmatprep.mubr.bf16.mxu0 0
        %719 = vmatmul.mubr.bf16.gmra.mrb[0].mxu0 %v614
        %v720 = vpop.f32.mrb[0].mxu0
        %v721 = vadd.f32 %v636, %v720
        %v722 = vpop.f32.mrb[0].mxu0
        %v723 = vpop.f32.mrb[0].mxu0
        %v724 = vpop.f32.mrb[0].mxu0
        %725 = vdwg.mxu0
        %726 = vst [vmem:[%s314] sm:$0xff] %v721
        %s727 = sand.u32 %s183, 1
        %s728 = scalar_lea.sflag [#allocation3], %s727
        %s729 = sand.u32 %s183, 1
        %s730 = smul.addr %s729, 8
        %s731 = scalar_lea.vmem [#allocation2], %s730
        %p732 = scmp.lt.s32.totalorder %s23, 1
        %s733 = scalar_select %p732, %s23, 1
        %s734 = smul.addr %s733, 8
        %s735 = scalar_lea.vmem %s8, %s734
        // Predicated region
        $region49: #{forward_eval.1} parent=47 // pred_check
          %p736 = pneg %p193
        $region50: #{forward_eval.1} parent=47 // pred_check_branch
          %738 = sbr.rel (%p736) target = $region52
        $region51: #{forward_eval.1} parent=47 // pred_region
          %s740 = ssub.s32 128, 128
          %741 = vsyncadd %s728, %s740
          %s742 = smul.addr %s23, 128
          %s743 = scalar_lea.hbm %s7, %s742
          %s745 = sshll.u32 %s731, 4
          %s746 = int_to_ptr.vmem [resolvable:$true] %s745
          %748 = dma.vmem_to_hbm [thread:$0]  %s746, 128, %s743, %s728
        $region52: #{forward_eval.1} parent=47 // pred_fallthru
          _
        // Predicated region
        $region53: #{forward_eval.1} parent=47 // pred_check
          %p749 = pneg %p219
        $region54: #{forward_eval.1} parent=47 // pred_check_branch
          %751 = sbr.rel (%p749) target = $region56
        $region55: #{forward_eval.1} parent=47 // pred_region
          _
        $region56: #{forward_eval.1} parent=47 // pred_fallthru
          _
      $region48: #{forward_eval.1} parent=5 // pred_fallthru
        _
      %p752 = scmp.le.s32.totalorder 2, %s18
      // Predicated region
      $region57: #{forward_eval.1} parent=5 // pred_check
        %p753 = pneg %p752
      $region58: #{forward_eval.1} parent=5 // pred_check_branch
        %755 = sbr.rel (%p753) target = $region60
      $region59: #{forward_eval.1} parent=5 // pred_region
        %s756 = ssub.s32 %s18, 2
        // Predicated region
        $region61: #{forward_eval.1} parent=59 // pred_check
          %p757 = pneg %p199
        $region62: #{forward_eval.1} parent=59 // pred_check_branch
          %759 = sbr.rel (%p757) target = $region64
        $region63: #{forward_eval.1} parent=59 // pred_region
          %s760 = sand.u32 %s184, 1
          %s761 = scalar_lea.sflag [#allocation3], %s760
          %s762 = sand.u32 %s184, 1
          %s763 = smul.addr %s762, 8
          %s764 = scalar_lea.vmem [#allocation2], %s763
          %765 = dma.done %s761, 128
        $region64: #{forward_eval.1} parent=59 // pred_fallthru
          _
        // Predicated region
        $region65: #{forward_eval.1} parent=59 // pred_check
          %p766 = pneg %p225
        $region66: #{forward_eval.1} parent=59 // pred_check_branch
          %768 = sbr.rel (%p766) target = $region68
        $region67: #{forward_eval.1} parent=59 // pred_region
          %p769 = scmp.lt.s32.totalorder %s24, 1
          %s770 = scalar_select %p769, %s24, 1
          %s771 = smul.addr %s770, 8
          %s772 = scalar_lea.vmem %s8, %s771
        $region68: #{forward_eval.1} parent=59 // pred_fallthru
          _
      $region60: #{forward_eval.1} parent=5 // pred_fallthru
        _
    $region6: #{forward_eval.1} parent=1 // loop_footer
      %s22 = sadd.s32 1, %s18
    $region7: #{forward_eval.1} parent=1 // loop_footer_branch
      %17 = sbr.rel target = $region3
    $region8: #{forward_eval.1} parent=1 // loop_exit
      _
    %773 = vsyncpa [#allocation3], 1
    %s774 = scalar_lea.sflag [#allocation3], 1
    %775 = vsyncpa %s774, 1

</llo_original>
